<compile_context>
chip_gen: v5e
topology: v5e:2x2
jax: 0.10.0
libtpu: 0.0.40
codegen_flags: <defaults>
</compile_context>

<pallas_src>
import jax
import jax.numpy as jnp
from jax.experimental import pallas as pl
from jax.experimental.pallas import tpu as pltpu

# ---------------- config (stand-ins for the `config` module) ----------------
RANDOM_SEED = 0
LEAKINESS = 0.01
STATE_SIZE = 32
ACTION_SIZE = 4
FC1 = 64
FC2 = 64
BN_EPS = 1e-5

HP = 128       # padded hidden / output width (lane-dense vregs and stores)
TILE_B = 128   # batch tile; batch grid axis is "parallel" (megacore on v7x)


# ------------------- kernel 1: BatchNorm batch statistics -------------------
def bn_stats_kernel(x_ref, stats_ref):
    x = x_ref[...]                                            # (B, S) f32
    mean = jnp.mean(x, axis=0, keepdims=True)                 # (1, S)
    var = jnp.mean((x - mean) ** 2, axis=0, keepdims=True)    # biased variance
    stats_ref[...] = jnp.concatenate(
        [mean, jax.lax.rsqrt(var + BN_EPS)], axis=0)          # (2, S)


def bn_stats(x):
    B, S = x.shape
    cost = pl.CostEstimate(flops=4 * B * S,
                           transcendentals=S,
                           bytes_accessed=4 * (B * S + 2 * S))
    return pl.pallas_call(
        bn_stats_kernel,
        out_shape=jax.ShapeDtypeStruct((2, S), jnp.float32),
        in_specs=[pl.BlockSpec(memory_space=pltpu.VMEM)],
        out_specs=pl.BlockSpec(memory_space=pltpu.VMEM),
        cost_estimate=cost,
    )(x)


# --------------------- kernel 2: normalize + 3-layer MLP --------------------
def actor_mlp_kernel(stats_ref, x_ref, w1_ref, w2_ref, w3_ref, b_ref, o_ref):
    x = x_ref[...]                                   # (TILE_B, S) f32
    mean = stats_ref[0:1, :]                         # (1, S)
    rstd = stats_ref[1:2, :]                         # (1, S)
    x_hat = (x - mean) * rstd                        # gamma/beta folded into w1/b1

    # fc1 + leaky_relu   (widths padded to 128; pad columns stay exactly 0)
    h1 = jnp.dot(x_hat, w1_ref[...], preferred_element_type=jnp.float32) + b_ref[0:1, :]
    h1 = jnp.maximum(h1, LEAKINESS * h1)

    # fc2 + leaky_relu
    h2 = jnp.dot(h1, w2_ref[...], preferred_element_type=jnp.float32) + b_ref[1:2, :]
    h2 = jnp.maximum(h2, LEAKINESS * h2)

    # fc3 + tanh (output lanes 4..127 are exactly 0, sliced off in the wrapper)
    h3 = jnp.dot(h2, w3_ref[...], preferred_element_type=jnp.float32) + b_ref[2:3, :]
    o_ref[...] = jnp.tanh(h3)


def actor_forward(state, packed):
    """state: (B, STATE_SIZE) f32 -> actions: (B, ACTION_SIZE) f32."""
    B, S = state.shape
    assert S == STATE_SIZE

    # Pass 1: batch statistics on the *unpadded* batch (exact BN semantics).
    stats = bn_stats(state)

    # Pass 2: batch-tiled normalize + MLP.
    Bp = ((B + TILE_B - 1) // TILE_B) * TILE_B
    if Bp != B:
        state = jnp.pad(state, ((0, Bp - B), (0, 0)))
    grid = (Bp // TILE_B,)

    flops = 2 * Bp * (S * HP + HP * HP + HP * HP) + 8 * Bp * HP
    bytes_acc = 4 * (Bp * S + 2 * S + S * HP + 2 * HP * HP + 3 * HP + Bp * HP)
    cost = pl.CostEstimate(flops=int(flops),
                           transcendentals=int(Bp * HP),
                           bytes_accessed=int(bytes_acc))

    out = pl.pallas_call(
        actor_mlp_kernel,
        out_shape=jax.ShapeDtypeStruct((Bp, HP), jnp.float32),
        grid=grid,
        in_specs=[
            pl.BlockSpec((2, S), lambda i: (0, 0)),        # stats
            pl.BlockSpec((TILE_B, S), lambda i: (i, 0)),   # state tile
            pl.BlockSpec((S, HP), lambda i: (0, 0)),       # w1 (folded, padded)
            pl.BlockSpec((HP, HP), lambda i: (0, 0)),      # w2 (padded)
            pl.BlockSpec((HP, HP), lambda i: (0, 0)),      # w3 (padded)
            pl.BlockSpec((3, HP), lambda i: (0, 0)),       # packed biases
        ],
        out_specs=pl.BlockSpec((TILE_B, HP), lambda i: (i, 0)),
        compiler_params=pltpu.CompilerParams(
            dimension_semantics=("parallel",)),
        cost_estimate=cost,
    )(stats, state, packed["w1"], packed["w2"], packed["w3"], packed["bias"])

    return out[:B, :ACTION_SIZE]


# ------------------------- parameter construction ---------------------------
def kaiming_normal_fan_in(key, fan_in, fan_out, a):
    # PyTorch kaiming_normal_(a=leak, mode='fan_in', nonlinearity='leaky_relu')
    gain = jnp.sqrt(2.0 / (1.0 + a * a))
    std = gain / jnp.sqrt(float(fan_in))
    # stored transposed: (in, out) so the kernel computes x @ W + b
    return std * jax.random.normal(key, (fan_in, fan_out), dtype=jnp.float32)


def linear_bias_default(key, fan_in, fan_out):
    # PyTorch nn.Linear default bias init: U(-1/sqrt(fan_in), 1/sqrt(fan_in))
    bound = 1.0 / jnp.sqrt(float(fan_in))
    return jax.random.uniform(key, (fan_out,), dtype=jnp.float32,
                              minval=-bound, maxval=bound)


def init_actor_params(seed=RANDOM_SEED):
    key = jax.random.PRNGKey(seed)
    k1, k2, k3, kb1, kb2, kb3 = jax.random.split(key, 6)
    return {
        # BatchNorm1d defaults: gamma=1, beta=0
        "gamma": jnp.ones((STATE_SIZE,), jnp.float32),
        "beta": jnp.zeros((STATE_SIZE,), jnp.float32),
        "w1": kaiming_normal_fan_in(k1, STATE_SIZE, FC1, LEAKINESS),
        "b1": linear_bias_default(kb1, STATE_SIZE, FC1),
        "w2": kaiming_normal_fan_in(k2, FC1, FC2, LEAKINESS),
        "b2": linear_bias_default(kb2, FC1, FC2),
        # fc3 weight: U(-0.003, 0.003)
        "w3": jax.random.uniform(k3, (FC2, ACTION_SIZE), dtype=jnp.float32,
                                 minval=-0.003, maxval=0.003),
        "b3": linear_bias_default(kb3, FC2, ACTION_SIZE),
    }


def pack_actor_params(p):
    """Fold BN affine into fc1 and pad/pack params for lane-dense kernel tiles."""
    # fc1(gamma*x_hat + beta) = x_hat @ (diag(gamma) @ W1) + (beta @ W1 + b1)
    w1f = p["gamma"][:, None] * p["w1"]          # (S, FC1)
    b1f = p["beta"] @ p["w1"] + p["b1"]          # (FC1,)

    w1p = jnp.zeros((STATE_SIZE, HP), jnp.float32).at[:, :FC1].set(w1f)
    w2p = jnp.zeros((HP, HP), jnp.float32).at[:FC1, :FC2].set(p["w2"])
    w3p = jnp.zeros((HP, HP), jnp.float32).at[:FC2, :ACTION_SIZE].set(p["w3"])
    bias = jnp.zeros((3, HP), jnp.float32)
    bias = bias.at[0, :FC1].set(b1f)
    bias = bias.at[1, :FC2].set(p["b2"])
    bias = bias.at[2, :ACTION_SIZE].set(p["b3"])
    return {"w1": w1p, "w2": w2p, "w3": w3p, "bias": bias}


# ------------------------------ pure-JAX reference ---------------------------
def actor_reference(x, p):
    mean = jnp.mean(x, axis=0, keepdims=True)
    var = jnp.mean((x - mean) ** 2, axis=0, keepdims=True)
    xb = (x - mean) * jax.lax.rsqrt(var + BN_EPS) * p["gamma"] + p["beta"]
    h1 = xb @ p["w1"] + p["b1"]
    h1 = jnp.where(h1 >= 0, h1, LEAKINESS * h1)
    h2 = h1 @ p["w2"] + p["b2"]
    h2 = jnp.where(h2 >= 0, h2, LEAKINESS * h2)
    return jnp.tanh(h2 @ p["w3"] + p["b3"])


# ------------------------------------ main -----------------------------------
if __name__ == "__main__":
    key = jax.random.PRNGKey(0)
    batch = 256  # fill the MXU M dimension (>=128 v5e, >=256 v6e/v7x)
    state = jax.random.normal(key, (batch, STATE_SIZE), dtype=jnp.float32)

    params = init_actor_params()
    packed = pack_actor_params(params)

    out = actor_forward(state, packed)
    out = jax.block_until_ready(out)

    ref = actor_reference(state, params)

    assert out.shape == (batch, ACTION_SIZE)
    assert bool(jnp.all(jnp.isfinite(out)))
    assert bool(jnp.all(jnp.abs(out) <= 1.0))
    assert bool(jnp.allclose(out, ref, atol=5e-3, rtol=0.0))
    print("KERNEL_OK")
</pallas_src>

<mosaic_0001>
module attributes {stable_mosaic.version = 11 : i64} {
  func.func @bn_stats_kernel(%arg0: memref<256x32xf32, #tpu.memory_space<vmem>>, %arg1: memref<2x32xf32, #tpu.memory_space<vmem>>) attributes {dimension_semantics = [], scalar_prefetch = 0 : i64, scratch_operands = 0 : i64, tpu.core_type = #tpu.core_type<tc>} {
    %c0 = arith.constant 0 : index
    %c0_0 = arith.constant 0 : index
    %0 = vector.load %arg0[%c0, %c0_0] : memref<256x32xf32, #tpu.memory_space<vmem>>, vector<256x32xf32>
    %cst = arith.constant dense<0.000000e+00> : vector<32xf32>
    %1 = vector.multi_reduction <add>, %0, %cst [0] : vector<256x32xf32> to vector<32xf32>
    %2 = vector.shape_cast %1 : vector<32xf32> to vector<1x32xf32>
    %cst_1 = arith.constant 2.560000e+02 : f32
    %3 = vector.broadcast %cst_1 : f32 to vector<1x32xf32>
    %4 = arith.divf %2, %3 : vector<1x32xf32>
    %5 = vector.broadcast %4 : vector<1x32xf32> to vector<256x32xf32>
    %6 = arith.subf %0, %5 : vector<256x32xf32>
    %7 = arith.mulf %6, %6 : vector<256x32xf32>
    %cst_2 = arith.constant dense<0.000000e+00> : vector<32xf32>
    %8 = vector.multi_reduction <add>, %7, %cst_2 [0] : vector<256x32xf32> to vector<32xf32>
    %9 = vector.shape_cast %8 : vector<32xf32> to vector<1x32xf32>
    %cst_3 = arith.constant 2.560000e+02 : f32
    %10 = vector.broadcast %cst_3 : f32 to vector<1x32xf32>
    %11 = arith.divf %9, %10 : vector<1x32xf32>
    %cst_4 = arith.constant 9.99999974E-6 : f32
    %12 = vector.broadcast %cst_4 : f32 to vector<1x32xf32>
    %13 = arith.addf %11, %12 : vector<1x32xf32>
    %14 = math.rsqrt %13 : vector<1x32xf32>
    %15 = tpu.concatenate %4, %14 in 0 : vector<1x32xf32>, vector<1x32xf32> -> vector<2x32xf32>
    %c0_5 = arith.constant 0 : index
    %c0_6 = arith.constant 0 : index
    %16 = vector.load %arg1[%c0_5, %c0_6] : memref<2x32xf32, #tpu.memory_space<vmem>>, vector<2x32xf32>
    tpu.vector_store %arg1[%c0_5, %c0_6], %15 {strides = array<i32>} : memref<2x32xf32, #tpu.memory_space<vmem>>, vector<2x32xf32>,
    return
  }
}

</mosaic_0001>

<llo_original>
// kernel: tpu_custom_call.1
$region0: #{tpu_custom_call.1}
  #allocation0 [shape = 'u32[]', space=smem, size = 0x4, offset = 0x4, fixed_abs, tag = 'smem constant byte address 0x4 - core index']
  #allocation1 [shape = 'u32[72,128]{1,0:T(1,128)}', space=vmem, size = 0x9000, scoped, tag = 'internal scratch']
  %s0 = inlined_call_operand.vmem [shape: f32[256,32], index: 0, kind: input, shape index: {}]
  %s1 = inlined_call_operand.hbm [shape: f32[2,32], index: 1, kind: output, shape index: {}]
  %s2 = sld [smem:[#allocation0]]
  $region14: #{tpu_custom_call.1} parent=0
    _
  %s4 = ssub.s32 1, %s2
  %s5 = scalar_select 0, %s4, %s2
  $region1: #{tpu_custom_call.1} parent=0
    #allocation2 [shape = 'u8[1024]{0}', space=vmem, size = 0x400, scoped, tag = 'output window, operand 0, single buffered']
    #allocation3 [shape = 's32[1]{0}', space=sflag, size = 0x4, scoped, tag = 'scoped memory for tpu_custom_call.1']
    %6 = vsyncpa [#allocation3], 0
    // Predicated region
    $region2: #{tpu_custom_call.1} parent=1 // pred_check
      _
    $region3: #{tpu_custom_call.1} parent=1 // pred_check_branch
      %8 = sbr.rel (0) target = $region5
    $region4: #{tpu_custom_call.1} parent=1 // pred_region
      _
    $region5: #{tpu_custom_call.1} parent=1 // pred_fallthru
      _
    %v9 = vld [vmem:[%s0] sm:$0xff]
    %v10 = vld [vmem:[%s0 + $0x8] sm:$0xff]
    %v11 = vld [vmem:[%s0 + $0x10] sm:$0xff]
    %v12 = vld [vmem:[%s0 + $0x18] sm:$0xff]
    %v13 = vld [vmem:[%s0 + $0x20] sm:$0xff]
    %v14 = vld [vmem:[%s0 + $0x28] sm:$0xff]
    %v15 = vld [vmem:[%s0 + $0x30] sm:$0xff]
    %v16 = vld [vmem:[%s0 + $0x38] sm:$0xff]
    %v17 = vld [vmem:[%s0 + $0x40] sm:$0xff]
    %v18 = vld [vmem:[%s0 + $0x48] sm:$0xff]
    %v19 = vld [vmem:[%s0 + $0x50] sm:$0xff]
    %v20 = vld [vmem:[%s0 + $0x58] sm:$0xff]
    %v21 = vld [vmem:[%s0 + $0x60] sm:$0xff]
    %v22 = vld [vmem:[%s0 + $0x68] sm:$0xff]
    %v23 = vld [vmem:[%s0 + $0x70] sm:$0xff]
    %v24 = vld [vmem:[%s0 + $0x78] sm:$0xff]
    %v25 = vld [vmem:[%s0 + $0x80] sm:$0xff]
    %v26 = vld [vmem:[%s0 + $0x88] sm:$0xff]
    %v27 = vld [vmem:[%s0 + $0x90] sm:$0xff]
    %v28 = vld [vmem:[%s0 + $0x98] sm:$0xff]
    %v29 = vld [vmem:[%s0 + $0xa0] sm:$0xff]
    %v30 = vld [vmem:[%s0 + $0xa8] sm:$0xff]
    %v31 = vld [vmem:[%s0 + $0xb0] sm:$0xff]
    %v32 = vld [vmem:[%s0 + $0xb8] sm:$0xff]
    %v33 = vld [vmem:[%s0 + $0xc0] sm:$0xff]
    %v34 = vld [vmem:[%s0 + $0xc8] sm:$0xff]
    %v35 = vld [vmem:[%s0 + $0xd0] sm:$0xff]
    %v36 = vld [vmem:[%s0 + $0xd8] sm:$0xff]
    %v37 = vld [vmem:[%s0 + $0xe0] sm:$0xff]
    %v38 = vld [vmem:[%s0 + $0xe8] sm:$0xff]
    %v39 = vld [vmem:[%s0 + $0xf0] sm:$0xff]
    %v40 = vld [vmem:[%s0 + $0xf8] sm:$0xff]
    %vm41 = vcmask 261120
    %v42 = vsel %vm41, %v9, 0.0
    %v43 = vsel %vm41, %v10, 0.0
    %v44 = vadd.f32 %v42, %v43
    %v45 = vsel %vm41, %v11, 0.0
    %v46 = vadd.f32 %v44, %v45
    %v47 = vsel %vm41, %v12, 0.0
    %v48 = vadd.f32 %v46, %v47
    %v49 = vsel %vm41, %v13, 0.0
    %v50 = vadd.f32 %v48, %v49
    %v51 = vsel %vm41, %v14, 0.0
    %v52 = vadd.f32 %v50, %v51
    %v53 = vsel %vm41, %v15, 0.0
    %v54 = vadd.f32 %v52, %v53
    %v55 = vsel %vm41, %v16, 0.0
    %v56 = vadd.f32 %v54, %v55
    %v57 = vsel %vm41, %v17, 0.0
    %v58 = vadd.f32 %v56, %v57
    %v59 = vsel %vm41, %v18, 0.0
    %v60 = vadd.f32 %v58, %v59
    %v61 = vsel %vm41, %v19, 0.0
    %v62 = vadd.f32 %v60, %v61
    %v63 = vsel %vm41, %v20, 0.0
    %v64 = vadd.f32 %v62, %v63
    %v65 = vsel %vm41, %v21, 0.0
    %v66 = vadd.f32 %v64, %v65
    %v67 = vsel %vm41, %v22, 0.0
    %v68 = vadd.f32 %v66, %v67
    %v69 = vsel %vm41, %v23, 0.0
    %v70 = vadd.f32 %v68, %v69
    %v71 = vsel %vm41, %v24, 0.0
    %v72 = vadd.f32 %v70, %v71
    %v73 = vsel %vm41, %v25, 0.0
    %v74 = vadd.f32 %v72, %v73
    %v75 = vsel %vm41, %v26, 0.0
    %v76 = vadd.f32 %v74, %v75
    %v77 = vsel %vm41, %v27, 0.0
    %v78 = vadd.f32 %v76, %v77
    %v79 = vsel %vm41, %v28, 0.0
    %v80 = vadd.f32 %v78, %v79
    %v81 = vsel %vm41, %v29, 0.0
    %v82 = vadd.f32 %v80, %v81
    %v83 = vsel %vm41, %v30, 0.0
    %v84 = vadd.f32 %v82, %v83
    %v85 = vsel %vm41, %v31, 0.0
    %v86 = vadd.f32 %v84, %v85
    %v87 = vsel %vm41, %v32, 0.0
    %v88 = vadd.f32 %v86, %v87
    %v89 = vsel %vm41, %v33, 0.0
    %v90 = vadd.f32 %v88, %v89
    %v91 = vsel %vm41, %v34, 0.0
    %v92 = vadd.f32 %v90, %v91
    %v93 = vsel %vm41, %v35, 0.0
    %v94 = vadd.f32 %v92, %v93
    %v95 = vsel %vm41, %v36, 0.0
    %v96 = vadd.f32 %v94, %v95
    %v97 = vsel %vm41, %v37, 0.0
    %v98 = vadd.f32 %v96, %v97
    %v99 = vsel %vm41, %v38, 0.0
    %v100 = vadd.f32 %v98, %v99
    %v101 = vsel %vm41, %v39, 0.0
    %v102 = vadd.f32 %v100, %v101
    %v103 = vsel %vm41, %v40, 0.0
    %v104 = vadd.f32 %v102, %v103
    %v105 = vrot.slane %v104, 4
    %v106 = vadd.f32 %v104, %v105
    %v107 = vrot.slane %v106, 2
    %v108 = vadd.f32 %v106, %v107
    %v109 = vrot.slane %v108, 1
    %v110 = vadd.f32 %v108, %v109
    %v111 = vrcp.pop 256.0
    %v112 = vmul.f32 256.0, %v111
    %v113 = vsub.f32 1.0, %v112
    %v114 = vmul.f32 %v111, %v113
    %v115 = vadd.f32 %v111, %v114
    %vm116 = vweird.f32 %v111
    %v117 = vsel %vm116, %v111, %v115
    %v118 = vmul.f32 %v110, %v117
    %v119 = vsub.f32 %v9, %v118
    %v120 = vsub.f32 %v10, %v118
    %v121 = vsub.f32 %v11, %v118
    %v122 = vsub.f32 %v12, %v118
    %v123 = vsub.f32 %v13, %v118
    %v124 = vsub.f32 %v14, %v118
    %v125 = vsub.f32 %v15, %v118
    %v126 = vsub.f32 %v16, %v118
    %v127 = vsub.f32 %v17, %v118
    %v128 = vsub.f32 %v18, %v118
    %v129 = vsub.f32 %v19, %v118
    %v130 = vsub.f32 %v20, %v118
    %v131 = vsub.f32 %v21, %v118
    %v132 = vsub.f32 %v22, %v118
    %v133 = vsub.f32 %v23, %v118
    %v134 = vsub.f32 %v24, %v118
    %v135 = vsub.f32 %v25, %v118
    %v136 = vsub.f32 %v26, %v118
    %v137 = vsub.f32 %v27, %v118
    %v138 = vsub.f32 %v28, %v118
    %v139 = vsub.f32 %v29, %v118
    %v140 = vsub.f32 %v30, %v118
    %v141 = vsub.f32 %v31, %v118
    %v142 = vsub.f32 %v32, %v118
    %v143 = vsub.f32 %v33, %v118
    %v144 = vsub.f32 %v34, %v118
    %v145 = vsub.f32 %v35, %v118
    %v146 = vsub.f32 %v36, %v118
    %v147 = vsub.f32 %v37, %v118
    %v148 = vsub.f32 %v38, %v118
    %v149 = vsub.f32 %v39, %v118
    %v150 = vsub.f32 %v40, %v118
    %v151 = vmul.f32 %v119, %v119
    %v152 = vmul.f32 %v120, %v120
    %v153 = vmul.f32 %v121, %v121
    %v154 = vmul.f32 %v122, %v122
    %v155 = vmul.f32 %v123, %v123
    %v156 = vmul.f32 %v124, %v124
    %v157 = vmul.f32 %v125, %v125
    %v158 = vmul.f32 %v126, %v126
    %v159 = vmul.f32 %v127, %v127
    %v160 = vmul.f32 %v128, %v128
    %v161 = vmul.f32 %v129, %v129
    %v162 = vmul.f32 %v130, %v130
    %v163 = vmul.f32 %v131, %v131
    %v164 = vmul.f32 %v132, %v132
    %v165 = vmul.f32 %v133, %v133
    %v166 = vmul.f32 %v134, %v134
    %v167 = vmul.f32 %v135, %v135
    %v168 = vmul.f32 %v136, %v136
    %v169 = vmul.f32 %v137, %v137
    %v170 = vmul.f32 %v138, %v138
    %v171 = vmul.f32 %v139, %v139
    %v172 = vmul.f32 %v140, %v140
    %v173 = vmul.f32 %v141, %v141
    %v174 = vmul.f32 %v142, %v142
    %v175 = vmul.f32 %v143, %v143
    %v176 = vmul.f32 %v144, %v144
    %v177 = vmul.f32 %v145, %v145
    %v178 = vmul.f32 %v146, %v146
    %v179 = vmul.f32 %v147, %v147
    %v180 = vmul.f32 %v148, %v148
    %v181 = vmul.f32 %v149, %v149
    %v182 = vmul.f32 %v150, %v150
    %v183 = vsel %vm41, %v151, 0.0
    %v184 = vsel %vm41, %v152, 0.0
    %v185 = vadd.f32 %v183, %v184
    %v186 = vsel %vm41, %v153, 0.0
    %v187 = vadd.f32 %v185, %v186
    %v188 = vsel %vm41, %v154, 0.0
    %v189 = vadd.f32 %v187, %v188
    %v190 = vsel %vm41, %v155, 0.0
    %v191 = vadd.f32 %v189, %v190
    %v192 = vsel %vm41, %v156, 0.0
    %v193 = vadd.f32 %v191, %v192
    %v194 = vsel %vm41, %v157, 0.0
    %v195 = vadd.f32 %v193, %v194
    %v196 = vsel %vm41, %v158, 0.0
    %v197 = vadd.f32 %v195, %v196
    %v198 = vsel %vm41, %v159, 0.0
    %v199 = vadd.f32 %v197, %v198
    %v200 = vsel %vm41, %v160, 0.0
    %v201 = vadd.f32 %v199, %v200
    %v202 = vsel %vm41, %v161, 0.0
    %v203 = vadd.f32 %v201, %v202
    %v204 = vsel %vm41, %v162, 0.0
    %v205 = vadd.f32 %v203, %v204
    %v206 = vsel %vm41, %v163, 0.0
    %v207 = vadd.f32 %v205, %v206
    %v208 = vsel %vm41, %v164, 0.0
    %v209 = vadd.f32 %v207, %v208
    %v210 = vsel %vm41, %v165, 0.0
    %v211 = vadd.f32 %v209, %v210
    %v212 = vsel %vm41, %v166, 0.0
    %v213 = vadd.f32 %v211, %v212
    %v214 = vsel %vm41, %v167, 0.0
    %v215 = vadd.f32 %v213, %v214
    %v216 = vsel %vm41, %v168, 0.0
    %v217 = vadd.f32 %v215, %v216
    %v218 = vsel %vm41, %v169, 0.0
    %v219 = vadd.f32 %v217, %v218
    %v220 = vsel %vm41, %v170, 0.0
    %v221 = vadd.f32 %v219, %v220
    %v222 = vsel %vm41, %v171, 0.0
    %v223 = vadd.f32 %v221, %v222
    %v224 = vsel %vm41, %v172, 0.0
    %v225 = vadd.f32 %v223, %v224
    %v226 = vsel %vm41, %v173, 0.0
    %v227 = vadd.f32 %v225, %v226
    %v228 = vsel %vm41, %v174, 0.0
    %v229 = vadd.f32 %v227, %v228
    %v230 = vsel %vm41, %v175, 0.0
    %v231 = vadd.f32 %v229, %v230
    %v232 = vsel %vm41, %v176, 0.0
    %v233 = vadd.f32 %v231, %v232
    %v234 = vsel %vm41, %v177, 0.0
    %v235 = vadd.f32 %v233, %v234
    %v236 = vsel %vm41, %v178, 0.0
    %v237 = vadd.f32 %v235, %v236
    %v238 = vsel %vm41, %v179, 0.0
    %v239 = vadd.f32 %v237, %v238
    %v240 = vsel %vm41, %v180, 0.0
    %v241 = vadd.f32 %v239, %v240
    %v242 = vsel %vm41, %v181, 0.0
    %v243 = vadd.f32 %v241, %v242
    %v244 = vsel %vm41, %v182, 0.0
    %v245 = vadd.f32 %v243, %v244
    %v246 = vrot.slane %v245, 4
    %v247 = vadd.f32 %v245, %v246
    %v248 = vrot.slane %v247, 2
    %v249 = vadd.f32 %v247, %v248
    %v250 = vrot.slane %v249, 1
    %v251 = vadd.f32 %v249, %v250
    %v252 = vmul.f32 %v251, %v117
    %v253 = vadd.f32 %v252, 1e-05
    %v254 = vrsqrt.pop %v253
    %v255 = vmul.f32 %v254, %v253
    %v256 = vmul.f32 %v255, %v254
    %v257 = vmul.f32 0.5, %v256
    %v258 = vsub.f32 1.5, %v257
    %v259 = vmul.f32 %v254, %v258
    %vm260 = vweird.f32 %v253
    %vm261 = vweird.f32 %v254
    %vm262 = vmor %vm260, %vm261
    %v263 = vsel %vm262, %v254, %v259
    %vm264 = vcmask 1040384
    %v265 = vsel %vm264, %v118, %v263
    %vm266 = vcmask 254976
    %267 = vst.msk [vmem:[#allocation2] sm:$0x3] %vm266, %v265
    // Predicated region
    $region6: #{tpu_custom_call.1} parent=1 // pred_check
      _
    $region7: #{tpu_custom_call.1} parent=1 // pred_check_branch
      %269 = sbr.rel (0) target = $region9
    $region8: #{tpu_custom_call.1} parent=1 // pred_region
      %271 = vsyncadd [#allocation3], 0
      %s273 = sshll.u32 [#allocation2], 4
      %s274 = int_to_ptr.vmem [resolvable:$true] %s273
      %s275 = sshll.u32 %s1, 4
      %s276 = int_to_ptr.hbm [resolvable:$true] %s275
      %278 = dma.vmem_to_hbm [thread:$0]  %s274, 32, %s276, [#allocation3]
    $region9: #{tpu_custom_call.1} parent=1 // pred_fallthru
      _
    // Predicated region
    $region10: #{tpu_custom_call.1} parent=1 // pred_check
      _
    $region11: #{tpu_custom_call.1} parent=1 // pred_check_branch
      %280 = sbr.rel (0) target = $region13
    $region12: #{tpu_custom_call.1} parent=1 // pred_region
      %282 = dma.done [#allocation3], 32
    $region13: #{tpu_custom_call.1} parent=1 // pred_fallthru
      _
    %283 = vsyncpa [#allocation3], 1

</llo_original>
